<compile_context>
chip_gen: v6e
topology: v6e:2x2x1
jax: 0.10.0
libtpu: 0.0.40
codegen_flags: <defaults>
</compile_context>

<pallas_src>
import math
import functools

import jax
import jax.numpy as jnp
from jax.experimental import pallas as pl
from jax.experimental.pallas import tpu as pltpu

# Prior hyper-parameters (prior_parameters dict of the PyTorch module).
SIGMA1 = 1.0
SIGMA2 = 0.1
PI = 0.5


def _round_up(x, m):
    return (x + m - 1) // m * m


def _stable_softplus(x):
    # Overflow-safe softplus; matches torch.nn.functional.softplus numerics.
    return jnp.maximum(x, 0.0) + jnp.log1p(jnp.exp(-jnp.abs(x)))


def _bayes_linear_kernel(x_ref, w_mu_ref, w_rho_ref, eps_w_ref,
                         b_mu_ref, b_rho_ref, eps_b_ref,
                         y_ref, lp_ref, lvp_ref,
                         *, sigma1, sigma2, pi, dim_input, dim_output, mxu_bf16):
    i = pl.program_id(0)
    td = w_mu_ref.shape[0]               # Dout tile size (static)

    w_mu = w_mu_ref[...]                 # (TD, Din_pad)
    w_rho = w_rho_ref[...]
    eps_w = eps_w_ref[...]
    b_mu = b_mu_ref[...]                 # (1, TD)
    b_rho = b_rho_ref[...]
    eps_b = eps_b_ref[...]

    # --- variational posterior sample ---
    sig_w = _stable_softplus(w_rho)
    sig_b = _stable_softplus(b_rho)
    w = w_mu + sig_w * eps_w             # padded rows/cols are exactly 0
    b = b_mu + sig_b * eps_b

    # --- y = x @ w.T + b : contract last dims directly (no transpose), bf16 MXU ---
    x = x_ref[...]
    if mxu_bf16:
        x_mm = x.astype(jnp.bfloat16)
        w_mm = w.astype(jnp.bfloat16)
    else:
        x_mm, w_mm = x, w
    y = jax.lax.dot_general(x_mm, w_mm,
                            dimension_numbers=(((1,), (1,)), ((), ())),
                            preferred_element_type=jnp.float32)
    y_ref[...] = (y + b).astype(y_ref.dtype)

    # --- masks for zero-padded rows / cols (only the log(sig) term needs them) ---
    row = jax.lax.broadcasted_iota(jnp.int32, w_mu.shape, 0) + i * td
    col = jax.lax.broadcasted_iota(jnp.int32, w_mu.shape, 1)
    w_mask = (row < dim_output) & (col < dim_input)
    b_col = jax.lax.broadcasted_iota(jnp.int32, b_mu.shape, 1) + i * td
    b_mask = b_col < dim_output

    # --- per-tile partial sums ---
    # prior: sum(w^2).  Padded entries of w and b are exactly zero -> no mask needed.
    tile_sq = jnp.sum(w * w) + jnp.sum(b * b)
    # posterior: per element  log(sig) + 0.5*eps^2   (since (w - mu)/sig == eps)
    q_w = jnp.where(w_mask, jnp.log(sig_w) + 0.5 * (eps_w * eps_w), 0.0)
    q_b = jnp.where(b_mask, jnp.log(sig_b) + 0.5 * (eps_b * eps_b), 0.0)
    tile_q = jnp.sum(q_w) + jnp.sum(q_b)

    # --- accumulate the two scalars across the (arbitrary) Dout-tile axis ---
    n_elem = dim_output * dim_input + dim_output        # true element count (no pad)
    ratio = sigma1 / sigma2
    c_prior = (math.log(pi)
               + math.log1p((1.0 - pi) / pi * (ratio * math.exp(-ratio ** 2)))
               - math.log(sigma1) - 0.5 * math.log(2.0 * math.pi))
    c_post = -0.5 * math.log(2.0 * math.pi)

    @pl.when(i == 0)
    def _():
        lp_ref[...] = jnp.full((1, 1), n_elem * c_prior, jnp.float32)
        lvp_ref[...] = jnp.full((1, 1), n_elem * c_post, jnp.float32)

    lp_ref[...] += jnp.reshape(-tile_sq / (2.0 * sigma1 ** 2), (1, 1))
    lvp_ref[...] += jnp.reshape(-tile_q, (1, 1))


def bayesian_linear_forward(x, w_mu, w_rho, b_mu, b_rho, eps_w, eps_b,
                            *, sigma1=SIGMA1, sigma2=SIGMA2, pi=PI, mxu_bf16=True):
    """Returns (y, log_prior, log_variational_posterior) like the PyTorch forward."""
    batch, dim_input = x.shape
    dim_output = w_mu.shape[0]
    f32 = jnp.float32

    x = x.astype(f32)
    w_mu = w_mu.astype(f32)
    w_rho = w_rho.astype(f32)
    eps_w = eps_w.astype(f32)
    b_mu = b_mu.reshape(1, dim_output).astype(f32)
    b_rho = b_rho.reshape(1, dim_output).astype(f32)
    eps_b = eps_b.reshape(1, dim_output).astype(f32)

    # --- lane/sublane-friendly padded shapes and Dout tile size ---
    din_pad = _round_up(dim_input, 128)
    batch_pad = _round_up(batch, 8)
    # Keep the three double-buffered weight-sized tiles within a ~12 MiB budget so
    # the kernel fits every generation's scoped VMEM (incl. v7x's 64 MiB / v5e's
    # small default), while staying lane-dense (tile width multiple of 128).
    budget = 12 * 1024 * 1024
    max_td = max(128, (budget // (3 * 2 * din_pad * 4)) // 128 * 128)
    td = min(512, max_td, _round_up(dim_output, 128))
    dout_pad = _round_up(dim_output, td)
    grid = (dout_pad // td,)

    def pad2(a, r, c):
        return jnp.pad(a, ((0, r - a.shape[0]), (0, c - a.shape[1])))

    x_p = pad2(x, batch_pad, din_pad)
    w_mu_p = pad2(w_mu, dout_pad, din_pad)
    w_rho_p = pad2(w_rho, dout_pad, din_pad)
    eps_w_p = pad2(eps_w, dout_pad, din_pad)
    b_mu_p = pad2(b_mu, 1, dout_pad)
    b_rho_p = pad2(b_rho, 1, dout_pad)
    eps_b_p = pad2(eps_b, 1, dout_pad)

    kernel = functools.partial(
        _bayes_linear_kernel, sigma1=sigma1, sigma2=sigma2, pi=pi,
        dim_input=dim_input, dim_output=dim_output, mxu_bf16=mxu_bf16)

    w_spec = pl.BlockSpec((td, din_pad), lambda i: (i, 0))
    b_spec = pl.BlockSpec((1, td), lambda i: (0, i))

    y_p, log_prior, log_var_post = pl.pallas_call(
        kernel,
        grid=grid,
        in_specs=[
            pl.BlockSpec((batch_pad, din_pad), lambda i: (0, 0)),   # x (stays resident)
            w_spec, w_spec, w_spec,                                 # w_mu, w_rho, eps_w
            b_spec, b_spec, b_spec,                                 # b_mu, b_rho, eps_b
        ],
        out_specs=(
            pl.BlockSpec((batch_pad, td), lambda i: (0, i)),        # y tile (lane-dense)
            pl.BlockSpec((1, 1), lambda i: (0, 0)),                 # log prior (accum)
            pl.BlockSpec((1, 1), lambda i: (0, 0)),                 # log var post (accum)
        ),
        out_shape=(
            jax.ShapeDtypeStruct((batch_pad, dout_pad), f32),
            jax.ShapeDtypeStruct((1, 1), f32),
            jax.ShapeDtypeStruct((1, 1), f32),
        ),
        compiler_params=pltpu.CompilerParams(
            dimension_semantics=("arbitrary",),   # scalar outputs accumulate over tiles
            vmem_limit_bytes=32 * 1024 * 1024,
        ),
    )(x_p, w_mu_p, w_rho_p, eps_w_p, b_mu_p, b_rho_p, eps_b_p)

    return y_p[:batch, :dim_output], log_prior[0, 0], log_var_post[0, 0]


def _reference(x, w_mu, w_rho, b_mu, b_rho, eps_w, eps_b,
               sigma1=SIGMA1, sigma2=SIGMA2, pi=PI, mxu_bf16=True):
    """Plain-JAX port of the PyTorch forward, for verification."""
    sig_w = _stable_softplus(w_rho)
    sig_b = _stable_softplus(b_rho)
    w = w_mu + sig_w * eps_w
    b = b_mu + sig_b * eps_b
    if mxu_bf16:
        y = jnp.dot(x.astype(jnp.bfloat16), w.T.astype(jnp.bfloat16),
                    preferred_element_type=jnp.float32) + b
    else:
        y = x @ w.T + b

    def prior_logprob(v):
        ratio = sigma1 / sigma2
        g1 = (-jnp.log(sigma1) - 0.5 * jnp.log(2.0 * jnp.pi)
              - v ** 2 / (2.0 * sigma1 ** 2))
        return jnp.sum(jnp.log(pi) + g1
                       + jnp.log1p((1 - pi) / pi * (ratio * jnp.exp(-ratio ** 2))))

    def q_logprob(v, mu, sig):
        return jnp.sum(-0.5 * jnp.log(2 * jnp.pi * sig ** 2)
                       - 0.5 * (v - mu) ** 2 / sig ** 2)

    log_prior = prior_logprob(w) + prior_logprob(b)
    log_var_post = q_logprob(w, w_mu, sig_w) + q_logprob(b, b_mu, sig_b)
    return y, log_prior, log_var_post


if __name__ == "__main__":
    batch, dim_input, dim_output = 8, 32, 16

    key = jax.random.PRNGKey(0)
    k_wmu, k_wrho, k_bmu, k_brho, k_ew, k_eb, k_x = jax.random.split(key, 7)

    # Parameters ~ N(0, 1), as in the module's __init__.
    w_mu = jax.random.normal(k_wmu, (dim_output, dim_input), jnp.float32)
    w_rho = jax.random.normal(k_wrho, (dim_output, dim_input), jnp.float32)
    b_mu = jax.random.normal(k_bmu, (dim_output,), jnp.float32)
    b_rho = jax.random.normal(k_brho, (dim_output,), jnp.float32)

    # Reparameterization noise (the stochastic part of forward()).
    eps_w = jax.random.normal(k_ew, (dim_output, dim_input), jnp.float32)
    eps_b = jax.random.normal(k_eb, (dim_output,), jnp.float32)

    x = jax.random.normal(k_x, (batch, dim_input), jnp.float32)

    y, log_prior, log_var_post = bayesian_linear_forward(
        x, w_mu, w_rho, b_mu, b_rho, eps_w, eps_b)
    jax.block_until_ready((y, log_prior, log_var_post))

    # Verify against a pure-JAX reference of the same math (bf16 MXU operands,
    # f32 accumulation, matching the kernel's matmul precision).
    y_ref, lp_ref, lvp_ref = _reference(x, w_mu, w_rho, b_mu, b_rho, eps_w, eps_b)
    assert jnp.allclose(y, y_ref, atol=5e-3, rtol=5e-3), "y mismatch"
    assert jnp.allclose(log_prior, lp_ref, atol=1e-2, rtol=1e-4), "log_prior mismatch"
    assert jnp.allclose(log_var_post, lvp_ref, atol=1e-2, rtol=1e-4), "log_var_post mismatch"

    print("KERNEL_OK")
</pallas_src>

<mosaic_0001>
module attributes {stable_mosaic.version = 11 : i64} {
  func.func @_bayes_linear_kernel(%arg0: i32, %arg1: memref<8x128xf32, #tpu.memory_space<vmem>>, %arg2: memref<128x128xf32, #tpu.memory_space<vmem>>, %arg3: memref<128x128xf32, #tpu.memory_space<vmem>>, %arg4: memref<128x128xf32, #tpu.memory_space<vmem>>, %arg5: memref<1x128xf32, #tpu.memory_space<vmem>>, %arg6: memref<1x128xf32, #tpu.memory_space<vmem>>, %arg7: memref<1x128xf32, #tpu.memory_space<vmem>>, %arg8: memref<8x128xf32, #tpu.memory_space<vmem>>, %arg9: memref<1x1xf32, #tpu.memory_space<vmem>>, %arg10: memref<1x1xf32, #tpu.memory_space<vmem>>) attributes {dimension_semantics = [#tpu.dimension_semantics<arbitrary>], iteration_bounds = array<i64: 1>, scalar_prefetch = 0 : i64, scratch_operands = 0 : i64, tpu.core_type = #tpu.core_type<tc>, window_params = [{pipeline_mode = #tpu.pipeline_mode<synchronous>, transform_indices = @transform_0, window_bounds = array<i64: 8, 128>}, {transform_indices = @transform_1, window_bounds = array<i64: 128, 128>}, {transform_indices = @transform_2, window_bounds = array<i64: 128, 128>}, {transform_indices = @transform_3, window_bounds = array<i64: 128, 128>}, {transform_indices = @transform_4, window_bounds = array<i64: 1, 128>}, {transform_indices = @transform_5, window_bounds = array<i64: 1, 128>}, {transform_indices = @transform_6, window_bounds = array<i64: 1, 128>}, {transform_indices = @transform_7, window_bounds = array<i64: 8, 128>}, {pipeline_mode = #tpu.pipeline_mode<synchronous>, transform_indices = @transform_8, window_bounds = array<i64: 1, 1>}, {pipeline_mode = #tpu.pipeline_mode<synchronous>, transform_indices = @transform_9, window_bounds = array<i64: 1, 1>}]} {
    %c0 = arith.constant 0 : index
    %c0_0 = arith.constant 0 : index
    %0 = vector.load %arg2[%c0, %c0_0] : memref<128x128xf32, #tpu.memory_space<vmem>>, vector<128x128xf32>
    %c0_1 = arith.constant 0 : index
    %c0_2 = arith.constant 0 : index
    %1 = vector.load %arg3[%c0_1, %c0_2] : memref<128x128xf32, #tpu.memory_space<vmem>>, vector<128x128xf32>
    %c0_3 = arith.constant 0 : index
    %c0_4 = arith.constant 0 : index
    %2 = vector.load %arg4[%c0_3, %c0_4] : memref<128x128xf32, #tpu.memory_space<vmem>>, vector<128x128xf32>
    %c0_5 = arith.constant 0 : index
    %c0_6 = arith.constant 0 : index
    %3 = vector.load %arg5[%c0_5, %c0_6] : memref<1x128xf32, #tpu.memory_space<vmem>>, vector<1x128xf32>
    %c0_7 = arith.constant 0 : index
    %c0_8 = arith.constant 0 : index
    %4 = vector.load %arg6[%c0_7, %c0_8] : memref<1x128xf32, #tpu.memory_space<vmem>>, vector<1x128xf32>
    %c0_9 = arith.constant 0 : index
    %c0_10 = arith.constant 0 : index
    %5 = vector.load %arg7[%c0_9, %c0_10] : memref<1x128xf32, #tpu.memory_space<vmem>>, vector<1x128xf32>
    %cst = arith.constant 0.000000e+00 : f32
    %6 = vector.broadcast %cst : f32 to vector<128x128xf32>
    %7 = arith.maximumf %1, %6 : vector<128x128xf32>
    %8 = math.absf %1 : vector<128x128xf32>
    %cst_11 = arith.constant 0.000000e+00 : f32
    %9 = vector.broadcast %cst_11 : f32 to vector<128x128xf32>
    %10 = arith.subf %9, %8 : vector<128x128xf32>
    %11 = math.exp %10 : vector<128x128xf32>
    %12 = math.log1p %11 : vector<128x128xf32>
    %13 = arith.addf %7, %12 : vector<128x128xf32>
    %cst_12 = arith.constant 0.000000e+00 : f32
    %14 = vector.broadcast %cst_12 : f32 to vector<1x128xf32>
    %15 = arith.maximumf %4, %14 : vector<1x128xf32>
    %16 = math.absf %4 : vector<1x128xf32>
    %cst_13 = arith.constant 0.000000e+00 : f32
    %17 = vector.broadcast %cst_13 : f32 to vector<1x128xf32>
    %18 = arith.subf %17, %16 : vector<1x128xf32>
    %19 = math.exp %18 : vector<1x128xf32>
    %20 = math.log1p %19 : vector<1x128xf32>
    %21 = arith.addf %15, %20 : vector<1x128xf32>
    %22 = arith.mulf %13, %2 : vector<128x128xf32>
    %23 = arith.addf %0, %22 : vector<128x128xf32>
    %24 = arith.mulf %21, %5 : vector<1x128xf32>
    %25 = arith.addf %3, %24 : vector<1x128xf32>
    %c0_14 = arith.constant 0 : index
    %c0_15 = arith.constant 0 : index
    %26 = vector.load %arg1[%c0_14, %c0_15] : memref<8x128xf32, #tpu.memory_space<vmem>>, vector<8x128xf32>
    %27 = arith.truncf %26 : vector<8x128xf32> to vector<8x128xbf16>
    %28 = arith.truncf %23 : vector<128x128xf32> to vector<128x128xbf16>
    %cst_16 = arith.constant dense<0.000000e+00> : vector<8x128xf32>
    %29 = tpu.matmul %27, %28, %cst_16 {dimension_numbers = #tpu.dot_dimension_numbers<[1], [1], [0], [0], [0, 0, 1, 0], [], []>} : vector<8x128xbf16>, vector<128x128xbf16>, vector<8x128xf32> -> vector<8x128xf32>
    %30 = vector.broadcast %25 : vector<1x128xf32> to vector<8x128xf32>
    %31 = arith.addf %29, %30 : vector<8x128xf32>
    %c0_17 = arith.constant 0 : index
    %c0_18 = arith.constant 0 : index
    %32 = vector.load %arg8[%c0_17, %c0_18] : memref<8x128xf32, #tpu.memory_space<vmem>>, vector<8x128xf32>
    tpu.vector_store %arg8[%c0_17, %c0_18], %31 {strides = array<i32>} : memref<8x128xf32, #tpu.memory_space<vmem>>, vector<8x128xf32>,
    %33 = tpu.iota {dimensions = array<i32: 0>} : vector<128x128xi32>
    %c128_i32 = arith.constant 128 : i32
    %34 = arith.muli %arg0, %c128_i32 : i32
    %35 = vector.broadcast %34 : i32 to vector<128x128xi32>
    %36 = arith.addi %33, %35 : vector<128x128xi32>
    %37 = tpu.iota {dimensions = array<i32: 1>} : vector<128x128xi32>
    %c16_i32 = arith.constant 16 : i32
    %38 = vector.broadcast %c16_i32 : i32 to vector<128x128xi32>
    %39 = arith.cmpi slt, %36, %38 : vector<128x128xi32>
    %c32_i32 = arith.constant 32 : i32
    %40 = vector.broadcast %c32_i32 : i32 to vector<128x128xi32>
    %41 = arith.cmpi slt, %37, %40 : vector<128x128xi32>
    %42 = arith.andi %39, %41 : vector<128x128xi1>
    %43 = tpu.iota {dimensions = array<i32: 1>} : vector<1x128xi32>
    %c128_i32_19 = arith.constant 128 : i32
    %44 = arith.muli %arg0, %c128_i32_19 : i32
    %45 = vector.broadcast %44 : i32 to vector<1x128xi32>
    %46 = arith.addi %43, %45 : vector<1x128xi32>
    %c16_i32_20 = arith.constant 16 : i32
    %47 = vector.broadcast %c16_i32_20 : i32 to vector<1x128xi32>
    %48 = arith.cmpi slt, %46, %47 : vector<1x128xi32>
    %49 = arith.mulf %23, %23 : vector<128x128xf32>
    %50 = vector.shape_cast %49 : vector<128x128xf32> to vector<1x128x128xf32>
    %cst_21 = arith.constant dense<0.000000e+00> : vector<1xf32>
    %51 = vector.multi_reduction <add>, %50, %cst_21 [1, 2] : vector<1x128x128xf32> to vector<1xf32>
    %52 = vector.shape_cast %51 : vector<1xf32> to vector<1x1x1xf32>
    %53 = vector.extract %52[0, 0, 0] : f32 from vector<1x1x1xf32>
    %54 = arith.mulf %25, %25 : vector<1x128xf32>
    %55 = vector.shape_cast %54 : vector<1x128xf32> to vector<1x1x128xf32>
    %cst_22 = arith.constant dense<0.000000e+00> : vector<1xf32>
    %56 = vector.multi_reduction <add>, %55, %cst_22 [1, 2] : vector<1x1x128xf32> to vector<1xf32>
    %57 = vector.shape_cast %56 : vector<1xf32> to vector<1x1x1xf32>
    %58 = vector.extract %57[0, 0, 0] : f32 from vector<1x1x1xf32>
    %59 = arith.addf %53, %58 : f32
    %60 = math.log %13 : vector<128x128xf32>
    %61 = arith.mulf %2, %2 : vector<128x128xf32>
    %cst_23 = arith.constant 5.000000e-01 : f32
    %62 = vector.broadcast %cst_23 : f32 to vector<128x128xf32>
    %63 = arith.mulf %62, %61 : vector<128x128xf32>
    %64 = arith.addf %60, %63 : vector<128x128xf32>
    %cst_24 = arith.constant 0.000000e+00 : f32
    %65 = vector.broadcast %cst_24 : f32 to vector<128x128xf32>
    %66 = arith.select %42, %64, %65 : vector<128x128xi1>, vector<128x128xf32>
    %67 = math.log %21 : vector<1x128xf32>
    %68 = arith.mulf %5, %5 : vector<1x128xf32>
    %cst_25 = arith.constant 5.000000e-01 : f32
    %69 = vector.broadcast %cst_25 : f32 to vector<1x128xf32>
    %70 = arith.mulf %69, %68 : vector<1x128xf32>
    %71 = arith.addf %67, %70 : vector<1x128xf32>
    %cst_26 = arith.constant 0.000000e+00 : f32
    %72 = vector.broadcast %cst_26 : f32 to vector<1x128xf32>
    %73 = arith.select %48, %71, %72 : vector<1x128xi1>, vector<1x128xf32>
    %74 = vector.shape_cast %66 : vector<128x128xf32> to vector<1x128x128xf32>
    %cst_27 = arith.constant dense<0.000000e+00> : vector<1xf32>
    %75 = vector.multi_reduction <add>, %74, %cst_27 [1, 2] : vector<1x128x128xf32> to vector<1xf32>
    %76 = vector.shape_cast %75 : vector<1xf32> to vector<1x1x1xf32>
    %77 = vector.extract %76[0, 0, 0] : f32 from vector<1x1x1xf32>
    %78 = vector.shape_cast %73 : vector<1x128xf32> to vector<1x1x128xf32>
    %cst_28 = arith.constant dense<0.000000e+00> : vector<1xf32>
    %79 = vector.multi_reduction <add>, %78, %cst_28 [1, 2] : vector<1x1x128xf32> to vector<1xf32>
    %80 = vector.shape_cast %79 : vector<1xf32> to vector<1x1x1xf32>
    %81 = vector.extract %80[0, 0, 0] : f32 from vector<1x1x1xf32>
    %82 = arith.addf %77, %81 : f32
    %c0_i32 = arith.constant 0 : i32
    %83 = arith.cmpi eq, %arg0, %c0_i32 : i32
    %84 = arith.extui %83 : i1 to i32
    %c0_i32_29 = arith.constant 0 : i32
    %85 = arith.cmpi ne, %84, %c0_i32_29 : i32
    scf.if %85 {
      %cst_41 = arith.constant -851.181274 : f32
      %97 = vector.broadcast %cst_41 : f32 to vector<1x1xf32>
      %c0_42 = arith.constant 0 : index
      %c0_43 = arith.constant 0 : index
      %98 = vector.load %arg9[%c0_42, %c0_43] : memref<1x1xf32, #tpu.memory_space<vmem>>, vector<1x1xf32>
      tpu.vector_store %arg9[%c0_42, %c0_43], %97 {strides = array<i32>} : memref<1x1xf32, #tpu.memory_space<vmem>>, vector<1x1xf32>,
      %cst_44 = arith.constant -485.199554 : f32
      %99 = vector.broadcast %cst_44 : f32 to vector<1x1xf32>
      %c0_45 = arith.constant 0 : index
      %c0_46 = arith.constant 0 : index
      %100 = vector.load %arg10[%c0_45, %c0_46] : memref<1x1xf32, #tpu.memory_space<vmem>>, vector<1x1xf32>
      tpu.vector_store %arg10[%c0_45, %c0_46], %99 {strides = array<i32>} : memref<1x1xf32, #tpu.memory_space<vmem>>, vector<1x1xf32>,
    } else {
    }
    %c0_30 = arith.constant 0 : index
    %c0_31 = arith.constant 0 : index
    %86 = vector.load %arg9[%c0_30, %c0_31] : memref<1x1xf32, #tpu.memory_space<vmem>>, vector<1x1xf32>
    %cst_32 = arith.constant 0.000000e+00 : f32
    %87 = arith.subf %cst_32, %59 : f32
    %cst_33 = arith.constant 2.000000e+00 : f32
    %88 = arith.divf %87, %cst_33 : f32
    %89 = vector.broadcast %88 : f32 to vector<1x1xf32>
    %90 = arith.addf %86, %89 : vector<1x1xf32>
    %c0_34 = arith.constant 0 : index
    %c0_35 = arith.constant 0 : index
    %91 = vector.load %arg9[%c0_34, %c0_35] : memref<1x1xf32, #tpu.memory_space<vmem>>, vector<1x1xf32>
    tpu.vector_store %arg9[%c0_34, %c0_35], %90 {strides = array<i32>} : memref<1x1xf32, #tpu.memory_space<vmem>>, vector<1x1xf32>,
    %c0_36 = arith.constant 0 : index
    %c0_37 = arith.constant 0 : index
    %92 = vector.load %arg10[%c0_36, %c0_37] : memref<1x1xf32, #tpu.memory_space<vmem>>, vector<1x1xf32>
    %cst_38 = arith.constant 0.000000e+00 : f32
    %93 = arith.subf %cst_38, %82 : f32
    %94 = vector.broadcast %93 : f32 to vector<1x1xf32>
    %95 = arith.addf %92, %94 : vector<1x1xf32>
    %c0_39 = arith.constant 0 : index
    %c0_40 = arith.constant 0 : index
    %96 = vector.load %arg10[%c0_39, %c0_40] : memref<1x1xf32, #tpu.memory_space<vmem>>, vector<1x1xf32>
    tpu.vector_store %arg10[%c0_39, %c0_40], %95 {strides = array<i32>} : memref<1x1xf32, #tpu.memory_space<vmem>>, vector<1x1xf32>,
    return
  }
  func.func @transform_0(%arg0: i32) -> (i32, i32) {
    %c0_i32 = arith.constant 0 : i32
    %c0_i32_0 = arith.constant 0 : i32
    %c0_i32_1 = arith.constant 0 : i32
    return %c0_i32, %c0_i32_0 : i32, i32
  }
  func.func @transform_1(%arg0: i32) -> (i32, i32) {
    %c0_i32 = arith.constant 0 : i32
    %c0_i32_0 = arith.constant 0 : i32
    return %arg0, %c0_i32 : i32, i32
  }
  func.func @transform_2(%arg0: i32) -> (i32, i32) {
    %c0_i32 = arith.constant 0 : i32
    %c0_i32_0 = arith.constant 0 : i32
    return %arg0, %c0_i32 : i32, i32
  }
  func.func @transform_3(%arg0: i32) -> (i32, i32) {
    %c0_i32 = arith.constant 0 : i32
    %c0_i32_0 = arith.constant 0 : i32
    return %arg0, %c0_i32 : i32, i32
  }
  func.func @transform_4(%arg0: i32) -> (i32, i32) {
    %c0_i32 = arith.constant 0 : i32
    %c0_i32_0 = arith.constant 0 : i32
    return %c0_i32, %arg0 : i32, i32
  }
  func.func @transform_5(%arg0: i32) -> (i32, i32) {
    %c0_i32 = arith.constant 0 : i32
    %c0_i32_0 = arith.constant 0 : i32
    return %c0_i32, %arg0 : i32, i32
  }
  func.func @transform_6(%arg0: i32) -> (i32, i32) {
    %c0_i32 = arith.constant 0 : i32
    %c0_i32_0 = arith.constant 0 : i32
    return %c0_i32, %arg0 : i32, i32
  }
  func.func @transform_7(%arg0: i32) -> (i32, i32) {
    %c0_i32 = arith.constant 0 : i32
    %c0_i32_0 = arith.constant 0 : i32
    return %c0_i32, %arg0 : i32, i32
  }
  func.func @transform_8(%arg0: i32) -> (i32, i32) {
    %c0_i32 = arith.constant 0 : i32
    %c0_i32_0 = arith.constant 0 : i32
    %c0_i32_1 = arith.constant 0 : i32
    return %c0_i32, %c0_i32_0 : i32, i32
  }
  func.func @transform_9(%arg0: i32) -> (i32, i32) {
    %c0_i32 = arith.constant 0 : i32
    %c0_i32_0 = arith.constant 0 : i32
    %c0_i32_1 = arith.constant 0 : i32
    return %c0_i32, %c0_i32_0 : i32, i32
  }
}

</mosaic_0001>

<llo_original>
// kernel: tpu_custom_call.1
$region0: #{tpu_custom_call.1}
  #allocation0 [shape = 'u32[]', space=smem, size = 0x4, offset = 0x4, fixed_abs, tag = 'smem constant byte address 0x4 - core index']
  #allocation1 [shape = 'u32[144,128]{1,0:T(1,128)}', space=vmem, size = 0x12000, scoped, tag = 'internal scratch']
  %s0 = inlined_call_operand.hbm [shape: f32[8,128], index: 0, kind: input, shape index: {}]
  %s1 = inlined_call_operand.hbm [shape: f32[128,128], index: 1, kind: input, shape index: {}]
  %s2 = inlined_call_operand.hbm [shape: f32[128,128], index: 2, kind: input, shape index: {}]
  %s3 = inlined_call_operand.hbm [shape: f32[128,128], index: 3, kind: input, shape index: {}]
  %s4 = inlined_call_operand.vmem [shape: f32[1,128], index: 4, kind: input, shape index: {}]
  %s5 = inlined_call_operand.vmem [shape: f32[1,128], index: 5, kind: input, shape index: {}]
  %s6 = inlined_call_operand.vmem [shape: f32[1,128], index: 6, kind: input, shape index: {}]
  %s7 = inlined_call_operand.hbm [shape: f32[8,128], index: 7, kind: output, shape index: {0}]
  %s8 = inlined_call_operand.hbm [shape: f32[1,1], index: 8, kind: output, shape index: {1}]
  %s9 = inlined_call_operand.hbm [shape: f32[1,1], index: 9, kind: output, shape index: {2}]
  %10 = xla_tuple %s7, %s8, %s9
  %s11 = sld [smem:[#allocation0]]
  $region74: #{tpu_custom_call.1} parent=0
    _
  %s13 = ssub.s32 1, %s11
  %s14 = scalar_select 0, %s13, %s11
  $region1: #{tpu_custom_call.1} parent=0
    #allocation2 [shape = 'u8[4096]{0}', space=vmem, size = 0x1000, scoped, tag = 'input window, operand 0, single buffered']
    #allocation3 [shape = 's32[1]{0}', space=sflag, size = 0x4, scoped, tag = 'scoped memory for tpu_custom_call.1']
    #allocation4 [shape = 's32[1]{0}', space=sflag, size = 0x4, scoped, tag = 'scoped memory for tpu_custom_call.1']
    #allocation5 [shape = 'u8[65536]{0}', space=vmem, size = 0x10000, scoped, tag = 'input window, operand 1, single buffered']
    #allocation6 [shape = 's32[1]{0}', space=sflag, size = 0x4, scoped, tag = 'scoped memory for tpu_custom_call.1']
    #allocation7 [shape = 'u8[65536]{0}', space=vmem, size = 0x10000, scoped, tag = 'input window, operand 2, single buffered']
    #allocation8 [shape = 'u8[65536]{0}', space=vmem, size = 0x10000, scoped, tag = 'input window, operand 3, single buffered']
    #allocation9 [shape = 's32[1]{0}', space=sflag, size = 0x4, scoped, tag = 'scoped memory for tpu_custom_call.1']
    #allocation10 [shape = 'u8[4096]{0}', space=vmem, size = 0x1000, scoped, tag = 'output window, operand 0, single buffered']
    #allocation11 [shape = 'u8[512]{0}', space=vmem, size = 0x400, scoped, tag = 'output window, operand 1, single buffered']
    #allocation12 [shape = 's32[1]{0}', space=sflag, size = 0x4, scoped, tag = 'scoped memory for tpu_custom_call.1']
    #allocation13 [shape = 'u8[512]{0}', space=vmem, size = 0x400, scoped, tag = 'output window, operand 2, single buffered']
    %15 = vsyncpa [#allocation3], 0
    %16 = vsyncpa [#allocation6], 0
    %17 = vsyncpa [#allocation9], 0
    %18 = vsyncpa [#allocation4], 0
    %19 = vsyncpa [#allocation12], 0
    // Predicated region
    $region2: #{tpu_custom_call.1} parent=1 // pred_check
      _
    $region3: #{tpu_custom_call.1} parent=1 // pred_check_branch
      %21 = sbr.rel (0) target = $region5
    $region4: #{tpu_custom_call.1} parent=1 // pred_region
      %s23 = ssub.s32 128, 128
      %24 = vsyncadd [#allocation3], %s23
      %s26 = sshll.u32 [#allocation2], 4
      %s27 = int_to_ptr.vmem [resolvable:$true] %s26
      %29 = dma.hbm_to_vmem [thread:$0]  %s0, 128, %s27, [#allocation3]
    $region5: #{tpu_custom_call.1} parent=1 // pred_fallthru
      _
    // Predicated region
    $region6: #{tpu_custom_call.1} parent=1 // pred_check
      _
    $region7: #{tpu_custom_call.1} parent=1 // pred_check_branch
      %31 = sbr.rel (0) target = $region9
    $region8: #{tpu_custom_call.1} parent=1 // pred_region
      %s33 = ssub.s32 2048, 2048
      %34 = vsyncadd [#allocation6], %s33
      %s35 = sshll.u32 [#allocation5], 4
      %s36 = int_to_ptr.vmem [resolvable:$true] %s35
      %41 = dma.hbm_to_vmem [thread:$0]  %s1, 2048, %s36, [#allocation6], 128, 128, 8
    $region9: #{tpu_custom_call.1} parent=1 // pred_fallthru
      _
    // Predicated region
    $region10: #{tpu_custom_call.1} parent=1 // pred_check
      _
    $region11: #{tpu_custom_call.1} parent=1 // pred_check_branch
      %43 = sbr.rel (0) target = $region13
    $region12: #{tpu_custom_call.1} parent=1 // pred_region
      %s45 = ssub.s32 2048, 2048
      %46 = vsyncadd [#allocation6], %s45
      %s47 = sshll.u32 [#allocation7], 4
      %s48 = int_to_ptr.vmem [resolvable:$true] %s47
      %53 = dma.hbm_to_vmem [thread:$0]  %s2, 2048, %s48, [#allocation6], 128, 128, 8
    $region13: #{tpu_custom_call.1} parent=1 // pred_fallthru
      _
    // Predicated region
    $region14: #{tpu_custom_call.1} parent=1 // pred_check
      _
    $region15: #{tpu_custom_call.1} parent=1 // pred_check_branch
      %55 = sbr.rel (0) target = $region17
    $region16: #{tpu_custom_call.1} parent=1 // pred_region
      %s57 = ssub.s32 2048, 2048
      %58 = vsyncadd [#allocation9], %s57
      %s59 = sshll.u32 [#allocation8], 4
      %s60 = int_to_ptr.vmem [resolvable:$true] %s59
      %65 = dma.hbm_to_vmem [thread:$0]  %s3, 2048, %s60, [#allocation9], 128, 128, 8
    $region17: #{tpu_custom_call.1} parent=1 // pred_fallthru
      _
    // Predicated region
    $region18: #{tpu_custom_call.1} parent=1 // pred_check
      _
    $region19: #{tpu_custom_call.1} parent=1 // pred_check_branch
      %67 = sbr.rel (0) target = $region21
    $region20: #{tpu_custom_call.1} parent=1 // pred_region
      _
    $region21: #{tpu_custom_call.1} parent=1 // pred_fallthru
      _
    // Predicated region
    $region22: #{tpu_custom_call.1} parent=1 // pred_check
      _
    $region23: #{tpu_custom_call.1} parent=1 // pred_check_branch
      %69 = sbr.rel (0) target = $region25
    $region24: #{tpu_custom_call.1} parent=1 // pred_region
      _
    $region25: #{tpu_custom_call.1} parent=1 // pred_fallthru
      _
    // Predicated region
    $region26: #{tpu_custom_call.1} parent=1 // pred_check
      _
    $region27: #{tpu_custom_call.1} parent=1 // pred_check_branch
      %71 = sbr.rel (0) target = $region29
    $region28: #{tpu_custom_call.1} parent=1 // pred_region
      _
    $region29: #{tpu_custom_call.1} parent=1 // pred_fallthru
      _
    // Predicated region
    $region30: #{tpu_custom_call.1} parent=1 // pred_check
      _
    $region31: #{tpu_custom_call.1} parent=1 // pred_check_branch
      %73 = sbr.rel (0) target = $region33
    $region32: #{tpu_custom_call.1} parent=1 // pred_region
      %74 = dma.done [#allocation3], 128
    $region33: #{tpu_custom_call.1} parent=1 // pred_fallthru
      _
    // Predicated region
    $region34: #{tpu_custom_call.1} parent=1 // pred_check
      _
    $region35: #{tpu_custom_call.1} parent=1 // pred_check_branch
      %76 = sbr.rel (0) target = $region37
    $region36: #{tpu_custom_call.1} parent=1 // pred_region
      %77 = dma.done [#allocation6], 2048
    $region37: #{tpu_custom_call.1} parent=1 // pred_fallthru
      _
    // Predicated region
    $region38: #{tpu_custom_call.1} parent=1 // pred_check
      _
    $region39: #{tpu_custom_call.1} parent=1 // pred_check_branch
      %79 = sbr.rel (0) target = $region41
    $region40: #{tpu_custom_call.1} parent=1 // pred_region
      %80 = dma.done [#allocation6], 2048
    $region41: #{tpu_custom_call.1} parent=1 // pred_fallthru
      _
    // Predicated region
    $region42: #{tpu_custom_call.1} parent=1 // pred_check
      _
    $region43: #{tpu_custom_call.1} parent=1 // pred_check_branch
      %82 = sbr.rel (0) target = $region45
    $region44: #{tpu_custom_call.1} parent=1 // pred_region
      %83 = dma.done [#allocation9], 2048
    $region45: #{tpu_custom_call.1} parent=1 // pred_fallthru
      _
    %v85 = vld [vmem:[#allocation5] sm:$0xff]
    %v86 = vld [vmem:[#allocation5 + $0x8] sm:$0xff]
    %v87 = vld [vmem:[#allocation5 + $0x10] sm:$0xff]
    %v88 = vld [vmem:[#allocation5 + $0x18] sm:$0xff]
    %v89 = vld [vmem:[#allocation5 + $0x20] sm:$0xff]
    %v90 = vld [vmem:[#allocation5 + $0x28] sm:$0xff]
    %v91 = vld [vmem:[#allocation5 + $0x30] sm:$0xff]
    %v92 = vld [vmem:[#allocation5 + $0x38] sm:$0xff]
    %v93 = vld [vmem:[#allocation5 + $0x40] sm:$0xff]
    %v94 = vld [vmem:[#allocation5 + $0x48] sm:$0xff]
    %v95 = vld [vmem:[#allocation5 + $0x50] sm:$0xff]
    %v96 = vld [vmem:[#allocation5 + $0x58] sm:$0xff]
    %v97 = vld [vmem:[#allocation5 + $0x60] sm:$0xff]
    %v98 = vld [vmem:[#allocation5 + $0x68] sm:$0xff]
    %v99 = vld [vmem:[#allocation5 + $0x70] sm:$0xff]
    %v100 = vld [vmem:[#allocation5 + $0x78] sm:$0xff]
    %v101 = vld [vmem:[#allocation7] sm:$0xff]
    %v102 = vld [vmem:[#allocation7 + $0x8] sm:$0xff]
    %v103 = vld [vmem:[#allocation7 + $0x10] sm:$0xff]
    %v104 = vld [vmem:[#allocation7 + $0x18] sm:$0xff]
    %v105 = vld [vmem:[#allocation7 + $0x20] sm:$0xff]
    %v106 = vld [vmem:[#allocation7 + $0x28] sm:$0xff]
    %v107 = vld [vmem:[#allocation7 + $0x30] sm:$0xff]
    %v108 = vld [vmem:[#allocation7 + $0x38] sm:$0xff]
    %v109 = vld [vmem:[#allocation7 + $0x40] sm:$0xff]
    %v110 = vld [vmem:[#allocation7 + $0x48] sm:$0xff]
    %v111 = vld [vmem:[#allocation7 + $0x50] sm:$0xff]
    %v112 = vld [vmem:[#allocation7 + $0x58] sm:$0xff]
    %v113 = vld [vmem:[#allocation7 + $0x60] sm:$0xff]
    %v114 = vld [vmem:[#allocation7 + $0x68] sm:$0xff]
    %v115 = vld [vmem:[#allocation7 + $0x70] sm:$0xff]
    %v116 = vld [vmem:[#allocation7 + $0x78] sm:$0xff]
    %v117 = vld [vmem:[#allocation8] sm:$0xff]
    %v118 = vld [vmem:[#allocation8 + $0x8] sm:$0xff]
    %v119 = vld [vmem:[#allocation8 + $0x10] sm:$0xff]
    %v120 = vld [vmem:[#allocation8 + $0x18] sm:$0xff]
    %v121 = vld [vmem:[#allocation8 + $0x20] sm:$0xff]
    %v122 = vld [vmem:[#allocation8 + $0x28] sm:$0xff]
    %v123 = vld [vmem:[#allocation8 + $0x30] sm:$0xff]
    %v124 = vld [vmem:[#allocation8 + $0x38] sm:$0xff]
    %v125 = vld [vmem:[#allocation8 + $0x40] sm:$0xff]
    %v126 = vld [vmem:[#allocation8 + $0x48] sm:$0xff]
    %v127 = vld [vmem:[#allocation8 + $0x50] sm:$0xff]
    %v128 = vld [vmem:[#allocation8 + $0x58] sm:$0xff]
    %v129 = vld [vmem:[#allocation8 + $0x60] sm:$0xff]
    %v130 = vld [vmem:[#allocation8 + $0x68] sm:$0xff]
    %v131 = vld [vmem:[#allocation8 + $0x70] sm:$0xff]
    %v132 = vld [vmem:[#allocation8 + $0x78] sm:$0xff]
    %v133 = vld [vmem:[%s4] sm:$0x1]
    %v134 = vld [vmem:[%s5] sm:$0x1]
    %v135 = vld [vmem:[%s6] sm:$0x1]
    %v136 = vmax.f32 %v101, 0.0
    %v137 = vmax.f32 %v102, 0.0
    %v138 = vmax.f32 %v103, 0.0
    %v139 = vmax.f32 %v104, 0.0
    %v140 = vmax.f32 %v105, 0.0
    %v141 = vmax.f32 %v106, 0.0
    %v142 = vmax.f32 %v107, 0.0
    %v143 = vmax.f32 %v108, 0.0
    %v144 = vmax.f32 %v109, 0.0
    %v145 = vmax.f32 %v110, 0.0
    %v146 = vmax.f32 %v111, 0.0
    %v147 = vmax.f32 %v112, 0.0
    %v148 = vmax.f32 %v113, 0.0
    %v149 = vmax.f32 %v114, 0.0
    %v150 = vmax.f32 %v115, 0.0
    %v151 = vmax.f32 %v116, 0.0
    %v152 = vand.u32 2147483647, %v101
    %v153 = vand.u32 2147483647, %v102
    %v154 = vand.u32 2147483647, %v103
    %v155 = vand.u32 2147483647, %v104
    %v156 = vand.u32 2147483647, %v105
    %v157 = vand.u32 2147483647, %v106
    %v158 = vand.u32 2147483647, %v107
    %v159 = vand.u32 2147483647, %v108
    %v160 = vand.u32 2147483647, %v109
    %v161 = vand.u32 2147483647, %v110
    %v162 = vand.u32 2147483647, %v111
    %v163 = vand.u32 2147483647, %v112
    %v164 = vand.u32 2147483647, %v113
    %v165 = vand.u32 2147483647, %v114
    %v166 = vand.u32 2147483647, %v115
    %v167 = vand.u32 2147483647, %v116
    %v168 = vsub.f32 0.0, %v152
    %v169 = vsub.f32 0.0, %v153
    %v170 = vsub.f32 0.0, %v154
    %v171 = vsub.f32 0.0, %v155
    %v172 = vsub.f32 0.0, %v156
    %v173 = vsub.f32 0.0, %v157
    %v174 = vsub.f32 0.0, %v158
    %v175 = vsub.f32 0.0, %v159
    %v176 = vsub.f32 0.0, %v160
    %v177 = vsub.f32 0.0, %v161
    %v178 = vsub.f32 0.0, %v162
    %v179 = vsub.f32 0.0, %v163
    %v180 = vsub.f32 0.0, %v164
    %v181 = vsub.f32 0.0, %v165
    %v182 = vsub.f32 0.0, %v166
    %v183 = vsub.f32 0.0, %v167
    %v184 = vmul.f32 %v168, 1.442695
    %v185 = vpow.pop %v184
    %v186 = vmul.f32 %v169, 1.442695
    %v187 = vpow.pop %v186
    %v188 = vmul.f32 %v170, 1.442695
    %v189 = vpow.pop %v188
    %v190 = vmul.f32 %v171, 1.442695
    %v191 = vpow.pop %v190
    %v192 = vmul.f32 %v172, 1.442695
    %v193 = vpow.pop %v192
    %v194 = vmul.f32 %v173, 1.442695
    %v195 = vpow.pop %v194
    %v196 = vmul.f32 %v174, 1.442695
    %v197 = vpow.pop %v196
    %v198 = vmul.f32 %v175, 1.442695
    %v199 = vpow.pop %v198
    %v200 = vmul.f32 %v176, 1.442695
    %v201 = vpow.pop %v200
    %v202 = vmul.f32 %v177, 1.442695
    %v203 = vpow.pop %v202
    %v204 = vmul.f32 %v178, 1.442695
    %v205 = vpow.pop %v204
    %v206 = vmul.f32 %v179, 1.442695
    %v207 = vpow.pop %v206
    %v208 = vmul.f32 %v180, 1.442695
    %v209 = vpow.pop %v208
    %v210 = vmul.f32 %v181, 1.442695
    %v211 = vpow.pop %v210
    %v212 = vmul.f32 %v182, 1.442695
    %v213 = vpow.pop %v212
    %v214 = vmul.f32 %v183, 1.442695
    %v215 = vpow.pop %v214
    %v216 = vadd.f32 %v185, 1.0
    %v217 = vlog2.pop %v216
    %v218 = vmul.f32 %v217, 0.6931472
    %v219 = vmul.f32 -0.5, %v185
    %v220 = vadd.f32 %v219, 1.0
    %v221 = vmul.f32 %v220, %v185
    %v222 = vand.u32 2147483647, %v185
    %vm223 = vcmp.lt.f32.partialorder %v222, 0.0004427343
    %v224 = vsel %vm223, %v221, %v218
    %v225 = vadd.f32 %v187, 1.0
    %v226 = vlog2.pop %v225
    %v227 = vmul.f32 %v226, 0.6931472
    %v228 = vmul.f32 -0.5, %v187
    %v229 = vadd.f32 %v228, 1.0
    %v230 = vmul.f32 %v229, %v187
    %v231 = vand.u32 2147483647, %v187
    %vm232 = vcmp.lt.f32.partialorder %v231, 0.0004427343
    %v233 = vsel %vm232, %v230, %v227
    %v234 = vadd.f32 %v189, 1.0
    %v235 = vlog2.pop %v234
    %v236 = vmul.f32 %v235, 0.6931472
    %v237 = vmul.f32 -0.5, %v189
    %v238 = vadd.f32 %v237, 1.0
    %v239 = vmul.f32 %v238, %v189
    %v240 = vand.u32 2147483647, %v189
    %vm241 = vcmp.lt.f32.partialorder %v240, 0.0004427343
    %v242 = vsel %vm241, %v239, %v236
    %v243 = vadd.f32 %v191, 1.0
    %v244 = vlog2.pop %v243
    %v245 = vmul.f32 %v244, 0.6931472
    %v246 = vmul.f32 -0.5, %v191
    %v247 = vadd.f32 %v246, 1.0
    %v248 = vmul.f32 %v247, %v191
    %v249 = vand.u32 2147483647, %v191
    %vm250 = vcmp.lt.f32.partialorder %v249, 0.0004427343
    %v251 = vsel %vm250, %v248, %v245
    %v252 = vadd.f32 %v193, 1.0
    %v253 = vlog2.pop %v252
    %v254 = vmul.f32 %v253, 0.6931472
    %v255 = vmul.f32 -0.5, %v193
    %v256 = vadd.f32 %v255, 1.0
    %v257 = vmul.f32 %v256, %v193
    %v258 = vand.u32 2147483647, %v193
    %vm259 = vcmp.lt.f32.partialorder %v258, 0.0004427343
    %v260 = vsel %vm259, %v257, %v254
    %v261 = vadd.f32 %v195, 1.0
    %v262 = vlog2.pop %v261
    %v263 = vmul.f32 %v262, 0.6931472
    %v264 = vmul.f32 -0.5, %v195
    %v265 = vadd.f32 %v264, 1.0
    %v266 = vmul.f32 %v265, %v195
    %v267 = vand.u32 2147483647, %v195
    %vm268 = vcmp.lt.f32.partialorder %v267, 0.0004427343
    %v269 = vsel %vm268, %v266, %v263
    %v270 = vadd.f32 %v197, 1.0
    %v271 = vlog2.pop %v270
    %v272 = vmul.f32 %v271, 0.6931472
    %v273 = vmul.f32 -0.5, %v197
    %v274 = vadd.f32 %v273, 1.0
    %v275 = vmul.f32 %v274, %v197
    %v276 = vand.u32 2147483647, %v197
    %vm277 = vcmp.lt.f32.partialorder %v276, 0.0004427343
    %v278 = vsel %vm277, %v275, %v272
    %v279 = vadd.f32 %v199, 1.0
    %v280 = vlog2.pop %v279
    %v281 = vmul.f32 %v280, 0.6931472
    %v282 = vmul.f32 -0.5, %v199
    %v283 = vadd.f32 %v282, 1.0
    %v284 = vmul.f32 %v283, %v199
    %v285 = vand.u32 2147483647, %v199
    %vm286 = vcmp.lt.f32.partialorder %v285, 0.0004427343
    %v287 = vsel %vm286, %v284, %v281
    %v288 = vadd.f32 %v201, 1.0
    %v289 = vlog2.pop %v288
    %v290 = vmul.f32 %v289, 0.6931472
    %v291 = vmul.f32 -0.5, %v201
    %v292 = vadd.f32 %v291, 1.0
    %v293 = vmul.f32 %v292, %v201
    %v294 = vand.u32 2147483647, %v201
    %vm295 = vcmp.lt.f32.partialorder %v294, 0.0004427343
    %v296 = vsel %vm295, %v293, %v290
    %v297 = vadd.f32 %v203, 1.0
    %v298 = vlog2.pop %v297
    %v299 = vmul.f32 %v298, 0.6931472
    %v300 = vmul.f32 -0.5, %v203
    %v301 = vadd.f32 %v300, 1.0
    %v302 = vmul.f32 %v301, %v203
    %v303 = vand.u32 2147483647, %v203
    %vm304 = vcmp.lt.f32.partialorder %v303, 0.0004427343
    %v305 = vsel %vm304, %v302, %v299
    %v306 = vadd.f32 %v205, 1.0
    %v307 = vlog2.pop %v306
    %v308 = vmul.f32 %v307, 0.6931472
    %v309 = vmul.f32 -0.5, %v205
    %v310 = vadd.f32 %v309, 1.0
    %v311 = vmul.f32 %v310, %v205
    %v312 = vand.u32 2147483647, %v205
    %vm313 = vcmp.lt.f32.partialorder %v312, 0.0004427343
    %v314 = vsel %vm313, %v311, %v308
    %v315 = vadd.f32 %v207, 1.0
    %v316 = vlog2.pop %v315
    %v317 = vmul.f32 %v316, 0.6931472
    %v318 = vmul.f32 -0.5, %v207
    %v319 = vadd.f32 %v318, 1.0
    %v320 = vmul.f32 %v319, %v207
    %v321 = vand.u32 2147483647, %v207
    %vm322 = vcmp.lt.f32.partialorder %v321, 0.0004427343
    %v323 = vsel %vm322, %v320, %v317
    %v324 = vadd.f32 %v209, 1.0
    %v325 = vlog2.pop %v324
    %v326 = vmul.f32 %v325, 0.6931472
    %v327 = vmul.f32 -0.5, %v209
    %v328 = vadd.f32 %v327, 1.0
    %v329 = vmul.f32 %v328, %v209
    %v330 = vand.u32 2147483647, %v209
    %vm331 = vcmp.lt.f32.partialorder %v330, 0.0004427343
    %v332 = vsel %vm331, %v329, %v326
    %v333 = vadd.f32 %v211, 1.0
    %v334 = vlog2.pop %v333
    %v335 = vmul.f32 %v334, 0.6931472
    %v336 = vmul.f32 -0.5, %v211
    %v337 = vadd.f32 %v336, 1.0
    %v338 = vmul.f32 %v337, %v211
    %v339 = vand.u32 2147483647, %v211
    %vm340 = vcmp.lt.f32.partialorder %v339, 0.0004427343
    %v341 = vsel %vm340, %v338, %v335
    %v342 = vadd.f32 %v213, 1.0
    %v343 = vlog2.pop %v342
    %v344 = vmul.f32 %v343, 0.6931472
    %v345 = vmul.f32 -0.5, %v213
    %v346 = vadd.f32 %v345, 1.0
    %v347 = vmul.f32 %v346, %v213
    %v348 = vand.u32 2147483647, %v213
    %vm349 = vcmp.lt.f32.partialorder %v348, 0.0004427343
    %v350 = vsel %vm349, %v347, %v344
    %v351 = vadd.f32 %v215, 1.0
    %v352 = vlog2.pop %v351
    %v353 = vmul.f32 %v352, 0.6931472
    %v354 = vmul.f32 -0.5, %v215
    %v355 = vadd.f32 %v354, 1.0
    %v356 = vmul.f32 %v355, %v215
    %v357 = vand.u32 2147483647, %v215
    %vm358 = vcmp.lt.f32.partialorder %v357, 0.0004427343
    %v359 = vsel %vm358, %v356, %v353
    %v360 = vadd.f32 %v136, %v224
    %v361 = vadd.f32 %v137, %v233
    %v362 = vadd.f32 %v138, %v242
    %v363 = vadd.f32 %v139, %v251
    %v364 = vadd.f32 %v140, %v260
    %v365 = vadd.f32 %v141, %v269
    %v366 = vadd.f32 %v142, %v278
    %v367 = vadd.f32 %v143, %v287
    %v368 = vadd.f32 %v144, %v296
    %v369 = vadd.f32 %v145, %v305
    %v370 = vadd.f32 %v146, %v314
    %v371 = vadd.f32 %v147, %v323
    %v372 = vadd.f32 %v148, %v332
    %v373 = vadd.f32 %v149, %v341
    %v374 = vadd.f32 %v150, %v350
    %v375 = vadd.f32 %v151, %v359
    %v376 = vmax.f32 %v134, 0.0
    %v377 = vand.u32 2147483647, %v134
    %v378 = vsub.f32 0.0, %v377
    %v379 = vmul.f32 %v378, 1.442695
    %v380 = vpow.pop %v379
    %v381 = vadd.f32 %v380, 1.0
    %v382 = vlog2.pop %v381
    %v383 = vmul.f32 %v382, 0.6931472
    %v384 = vmul.f32 -0.5, %v380
    %v385 = vadd.f32 %v384, 1.0
    %v386 = vmul.f32 %v385, %v380
    %v387 = vand.u32 2147483647, %v380
    %vm388 = vcmp.lt.f32.partialorder %v387, 0.0004427343
    %v389 = vsel %vm388, %v386, %v383
    %v390 = vadd.f32 %v376, %v389
    %v391 = vmul.f32 %v360, %v117
    %v392 = vmul.f32 %v361, %v118
    %v393 = vmul.f32 %v362, %v119
    %v394 = vmul.f32 %v363, %v120
    %v395 = vmul.f32 %v364, %v121
    %v396 = vmul.f32 %v365, %v122
    %v397 = vmul.f32 %v366, %v123
    %v398 = vmul.f32 %v367, %v124
    %v399 = vmul.f32 %v368, %v125
    %v400 = vmul.f32 %v369, %v126
    %v401 = vmul.f32 %v370, %v127
    %v402 = vmul.f32 %v371, %v128
    %v403 = vmul.f32 %v372, %v129
    %v404 = vmul.f32 %v373, %v130
    %v405 = vmul.f32 %v374, %v131
    %v406 = vmul.f32 %v375, %v132
    %v407 = vadd.f32 %v85, %v391
    %v408 = vadd.f32 %v86, %v392
    %v409 = vadd.f32 %v87, %v393
    %v410 = vadd.f32 %v88, %v394
    %v411 = vadd.f32 %v89, %v395
    %v412 = vadd.f32 %v90, %v396
    %v413 = vadd.f32 %v91, %v397
    %v414 = vadd.f32 %v92, %v398
    %v415 = vadd.f32 %v93, %v399
    %v416 = vadd.f32 %v94, %v400
    %v417 = vadd.f32 %v95, %v401
    %v418 = vadd.f32 %v96, %v402
    %v419 = vadd.f32 %v97, %v403
    %v420 = vadd.f32 %v98, %v404
    %v421 = vadd.f32 %v99, %v405
    %v422 = vadd.f32 %v100, %v406
    %v423 = vmul.f32 %v390, %v135
    %v424 = vadd.f32 %v133, %v423
    %v425 = vld [vmem:[#allocation2] sm:$0xff]
    %v426 = vpack.c.bf16 %v425, %v425
    %v427 = vpack.c.bf16 %v408, %v407
    %v428 = vpack.c.bf16 %v410, %v409
    %v429 = vpack.c.bf16 %v412, %v411
    %v430 = vpack.c.bf16 %v414, %v413
    %v431 = vpack.c.bf16 %v416, %v415
    %v432 = vpack.c.bf16 %v418, %v417
    %v433 = vpack.c.bf16 %v420, %v419
    %v434 = vpack.c.bf16 %v422, %v421
    %v436 = vlaneseq
    %v437 = vshrl.u32 %v436, 7
    %v438 = vsub.s32 0, %v437
    %v439 = vrot.slane %v424, %v438
    %441 = vmatprep.subr.bf16.mxu0 0
    %442 = vmatpush1.bf16.xpose.msra.mxu0 %v434
    %443 = vmatprep.subr.bf16.mxu0 0
    %444 = vmatpush1.bf16.xpose.msra.mxu0 %v433
    %445 = vmatprep.subr.bf16.mxu0 0
    %446 = vmatpush1.bf16.xpose.msra.mxu0 %v432
    %447 = vmatprep.subr.bf16.mxu0 0
    %448 = vmatpush1.bf16.xpose.msra.mxu0 %v431
    %449 = vmatprep.subr.bf16.mxu0 0
    %450 = vmatpush1.bf16.xpose.msra.mxu0 %v430
    %451 = vmatprep.subr.bf16.mxu0 0
    %452 = vmatpush1.bf16.xpose.msra.mxu0 %v429
    %453 = vmatprep.subr.bf16.mxu0 0
    %454 = vmatpush1.bf16.xpose.msra.mxu0 %v428
    %455 = vmatprep.subr.bf16.mxu0 0
    %456 = vmatpush1.bf16.xpose.msra.mxu0 %v427
    %457 = vmatprep.subr.bf16.mxu0 0
    %458 = vmatpush2.bf16.xpose.msra.mxu0 0
    %459 = vmatprep.subr.bf16.mxu0 0
    %460 = vmatpush2.bf16.xpose.msra.mxu0 0
    %461 = vmatprep.subr.bf16.mxu0 0
    %462 = vmatpush2.bf16.xpose.msra.mxu0 0
    %463 = vmatprep.subr.bf16.mxu0 0
    %464 = vmatpush2.bf16.xpose.msra.mxu0 0
    %465 = vmatprep.subr.bf16.mxu0 0
    %466 = vmatpush2.bf16.xpose.msra.mxu0 0
    %467 = vmatprep.subr.bf16.mxu0 0
    %468 = vmatpush2.bf16.xpose.msra.mxu0 0
    %469 = vmatprep.subr.bf16.mxu0 0
    %470 = vmatpush2.bf16.xpose.msra.mxu0 0
    %471 = vmatprep.subr.bf16.mxu0 0
    %472 = vmatpush2.bf16.xpose.msra.mxu0 0
    %473 = vmatprep.mubr.bf16.mxu0 0
    %474 = vmatmul.mubr.bf16.gmra.mxu0 %v426
    %v475 = vpop.f32.mrf.mxu0
    %v476 = vadd.f32 %v439, %v475
    %v477 = vpop.f32.mrf.mxu0
    %v478 = vpop.f32.mrf.mxu0
    %v479 = vpop.f32.mrf.mxu0
    %480 = vdwg.mxu0
    %481 = vst [vmem:[#allocation10] sm:$0xff] %v476
    %v482 = vlaneseq
    %v483 = vshrl.u32 %v482, 7
    %v484 = vadd.s32 %v483, 8
    %v485 = vadd.s32 %v483, 16
    %v486 = vadd.s32 %v483, 24
    %v487 = vadd.s32 %v483, 32
    %v488 = vadd.s32 %v483, 40
    %v489 = vadd.s32 %v483, 48
    %v490 = vadd.s32 %v483, 56
    %v491 = vadd.s32 %v483, 64
    %v492 = vadd.s32 %v483, 72
    %v493 = vadd.s32 %v483, 80
    %v494 = vadd.s32 %v483, 88
    %v495 = vadd.s32 %v483, 96
    %v496 = vadd.s32 %v483, 104
    %v497 = vadd.s32 %v483, 112
    %v498 = vadd.s32 %v483, 120
    %s499 = smul.u32 0, 128
    %v500 = vstv %s499
    %v501 = vadd.s32 %v483, %v500
    %v502 = vadd.s32 %v484, %v500
    %v503 = vadd.s32 %v485, %v500
    %v504 = vadd.s32 %v486, %v500
    %v505 = vadd.s32 %v487, %v500
    %v506 = vadd.s32 %v488, %v500
    %v507 = vadd.s32 %v489, %v500
    %v508 = vadd.s32 %v490, %v500
    %v509 = vadd.s32 %v491, %v500
    %v510 = vadd.s32 %v492, %v500
    %v511 = vadd.s32 %v493, %v500
    %v512 = vadd.s32 %v494, %v500
    %v513 = vadd.s32 %v495, %v500
    %v514 = vadd.s32 %v496, %v500
    %v515 = vadd.s32 %v497, %v500
    %v516 = vadd.s32 %v498, %v500
    %v517 = vlaneseq
    %v518 = vand.u32 %v517, 127
    %vm519 = vcmp.lt.s32.totalorder %v501, 16
    %vm520 = vcmp.lt.s32.totalorder %v502, 16
    %vm521 = vcmp.lt.s32.totalorder %v503, 16
    %vm522 = vcmp.lt.s32.totalorder %v504, 16
    %vm523 = vcmp.lt.s32.totalorder %v505, 16
    %vm524 = vcmp.lt.s32.totalorder %v506, 16
    %vm525 = vcmp.lt.s32.totalorder %v507, 16
    %vm526 = vcmp.lt.s32.totalorder %v508, 16
    %vm527 = vcmp.lt.s32.totalorder %v509, 16
    %vm528 = vcmp.lt.s32.totalorder %v510, 16
    %vm529 = vcmp.lt.s32.totalorder %v511, 16
    %vm530 = vcmp.lt.s32.totalorder %v512, 16
    %vm531 = vcmp.lt.s32.totalorder %v513, 16
    %vm532 = vcmp.lt.s32.totalorder %v514, 16
    %vm533 = vcmp.lt.s32.totalorder %v515, 16
    %vm534 = vcmp.lt.s32.totalorder %v516, 16
    %vm535 = vcmp.lt.s32.totalorder %v518, 32
    %vm536 = vmand %vm519, %vm535
    %vm537 = vmand %vm520, %vm535
    %vm538 = vmand %vm521, %vm535
    %vm539 = vmand %vm522, %vm535
    %vm540 = vmand %vm523, %vm535
    %vm541 = vmand %vm524, %vm535
    %vm542 = vmand %vm525, %vm535
    %vm543 = vmand %vm526, %vm535
    %vm544 = vmand %vm527, %vm535
    %vm545 = vmand %vm528, %vm535
    %vm546 = vmand %vm529, %vm535
    %vm547 = vmand %vm530, %vm535
    %vm548 = vmand %vm531, %vm535
    %vm549 = vmand %vm532, %vm535
    %vm550 = vmand %vm533, %vm535
    %vm551 = vmand %vm534, %vm535
    %v552 = vadd.s32 %v518, %v500
    %vm553 = vcmp.lt.s32.totalorder %v552, 16
    %v554 = vmul.f32 %v407, %v407
    %v555 = vmul.f32 %v408, %v408
    %v556 = vmul.f32 %v409, %v409
    %v557 = vmul.f32 %v410, %v410
    %v558 = vmul.f32 %v411, %v411
    %v559 = vmul.f32 %v412, %v412
    %v560 = vmul.f32 %v413, %v413
    %v561 = vmul.f32 %v414, %v414
    %v562 = vmul.f32 %v415, %v415
    %v563 = vmul.f32 %v416, %v416
    %v564 = vmul.f32 %v417, %v417
    %v565 = vmul.f32 %v418, %v418
    %v566 = vmul.f32 %v419, %v419
    %v567 = vmul.f32 %v420, %v420
    %v568 = vmul.f32 %v421, %v421
    %v569 = vmul.f32 %v422, %v422
    %v570 = vadd.f32 %v554, %v555
    %v571 = vadd.f32 %v570, %v556
    %v572 = vadd.f32 %v571, %v557
    %v573 = vadd.f32 %v572, %v558
    %v574 = vadd.f32 %v573, %v559
    %v575 = vadd.f32 %v574, %v560
    %v576 = vadd.f32 %v575, %v561
    %v577 = vadd.f32 %v576, %v562
    %v578 = vadd.f32 %v577, %v563
    %v579 = vadd.f32 %v578, %v564
    %v580 = vadd.f32 %v579, %v565
    %v581 = vadd.f32 %v580, %v566
    %v582 = vadd.f32 %v581, %v567
    %v583 = vadd.f32 %v582, %v568
    %v584 = vadd.f32 %v583, %v569
    %585 = vadd.xlane.f32.xlu0 %v584
    %v586 = vpop.xlane.xlu0 %585
    %v587 = vrot.slane %v586, 4
    %v588 = vadd.f32 %v586, %v587
    %v589 = vrot.slane %v588, 2
    %v590 = vadd.f32 %v588, %v589
    %v591 = vrot.slane %v590, 1
    %v592 = vadd.f32 %v590, %v591
    %s593 = vtos %v592
    %v594 = vmul.f32 %v424, %v424
    %vm595 = vcmask 1040384
    %v596 = vsel %vm595, %v594, 0.0
    %597 = vadd.xlane.f32.xlu0 %v596
    %v598 = vpop.xlane.xlu0 %597
    %v599 = vrot.slane %v598, 4
    %v600 = vadd.f32 %v598, %v599
    %v601 = vrot.slane %v600, 2
    %v602 = vadd.f32 %v600, %v601
    %v603 = vrot.slane %v602, 1
    %v604 = vadd.f32 %v602, %v603
    %s605 = vtos %v604
    %s606 = sadd.f32 %s593, %s605
    %v607 = vlog2.pop %v360
    %v608 = vmul.f32 %v607, 0.6931472
    %v609 = vlog2.pop %v361
    %v610 = vmul.f32 %v609, 0.6931472
    %v611 = vlog2.pop %v362
    %v612 = vmul.f32 %v611, 0.6931472
    %v613 = vlog2.pop %v363
    %v614 = vmul.f32 %v613, 0.6931472
    %v615 = vlog2.pop %v364
    %v616 = vmul.f32 %v615, 0.6931472
    %v617 = vlog2.pop %v365
    %v618 = vmul.f32 %v617, 0.6931472
    %v619 = vlog2.pop %v366
    %v620 = vmul.f32 %v619, 0.6931472
    %v621 = vlog2.pop %v367
    %v622 = vmul.f32 %v621, 0.6931472
    %v623 = vlog2.pop %v368
    %v624 = vmul.f32 %v623, 0.6931472
    %v625 = vlog2.pop %v369
    %v626 = vmul.f32 %v625, 0.6931472
    %v627 = vlog2.pop %v370
    %v628 = vmul.f32 %v627, 0.6931472
    %v629 = vlog2.pop %v371
    %v630 = vmul.f32 %v629, 0.6931472
    %v631 = vlog2.pop %v372
    %v632 = vmul.f32 %v631, 0.6931472
    %v633 = vlog2.pop %v373
    %v634 = vmul.f32 %v633, 0.6931472
    %v635 = vlog2.pop %v374
    %v636 = vmul.f32 %v635, 0.6931472
    %v637 = vlog2.pop %v375
    %v638 = vmul.f32 %v637, 0.6931472
    %v639 = vmul.f32 %v117, %v117
    %v640 = vmul.f32 %v118, %v118
    %v641 = vmul.f32 %v119, %v119
    %v642 = vmul.f32 %v120, %v120
    %v643 = vmul.f32 %v121, %v121
    %v644 = vmul.f32 %v122, %v122
    %v645 = vmul.f32 %v123, %v123
    %v646 = vmul.f32 %v124, %v124
    %v647 = vmul.f32 %v125, %v125
    %v648 = vmul.f32 %v126, %v126
    %v649 = vmul.f32 %v127, %v127
    %v650 = vmul.f32 %v128, %v128
    %v651 = vmul.f32 %v129, %v129
    %v652 = vmul.f32 %v130, %v130
    %v653 = vmul.f32 %v131, %v131
    %v654 = vmul.f32 %v132, %v132
    %v655 = vmul.f32 %v639, 0.5
    %v656 = vmul.f32 %v640, 0.5
    %v657 = vmul.f32 %v641, 0.5
    %v658 = vmul.f32 %v642, 0.5
    %v659 = vmul.f32 %v643, 0.5
    %v660 = vmul.f32 %v644, 0.5
    %v661 = vmul.f32 %v645, 0.5
    %v662 = vmul.f32 %v646, 0.5
    %v663 = vmul.f32 %v647, 0.5
    %v664 = vmul.f32 %v648, 0.5
    %v665 = vmul.f32 %v649, 0.5
    %v666 = vmul.f32 %v650, 0.5
    %v667 = vmul.f32 %v651, 0.5
    %v668 = vmul.f32 %v652, 0.5
    %v669 = vmul.f32 %v653, 0.5
    %v670 = vmul.f32 %v654, 0.5
    %v671 = vadd.f32 %v608, %v655
    %v672 = vadd.f32 %v610, %v656
    %v673 = vadd.f32 %v612, %v657
    %v674 = vadd.f32 %v614, %v658
    %v675 = vadd.f32 %v616, %v659
    %v676 = vadd.f32 %v618, %v660
    %v677 = vadd.f32 %v620, %v661
    %v678 = vadd.f32 %v622, %v662
    %v679 = vadd.f32 %v624, %v663
    %v680 = vadd.f32 %v626, %v664
    %v681 = vadd.f32 %v628, %v665
    %v682 = vadd.f32 %v630, %v666
    %v683 = vadd.f32 %v632, %v667
    %v684 = vadd.f32 %v634, %v668
    %v685 = vadd.f32 %v636, %v669
    %v686 = vadd.f32 %v638, %v670
    %v687 = vsel %vm536, %v671, 0.0
    %v688 = vsel %vm537, %v672, 0.0
    %v689 = vsel %vm538, %v673, 0.0
    %v690 = vsel %vm539, %v674, 0.0
    %v691 = vsel %vm540, %v675, 0.0
    %v692 = vsel %vm541, %v676, 0.0
    %v693 = vsel %vm542, %v677, 0.0
    %v694 = vsel %vm543, %v678, 0.0
    %v695 = vsel %vm544, %v679, 0.0
    %v696 = vsel %vm545, %v680, 0.0
    %v697 = vsel %vm546, %v681, 0.0
    %v698 = vsel %vm547, %v682, 0.0
    %v699 = vsel %vm548, %v683, 0.0
    %v700 = vsel %vm549, %v684, 0.0
    %v701 = vsel %vm550, %v685, 0.0
    %v702 = vsel %vm551, %v686, 0.0
    %v703 = vlog2.pop %v390
    %v704 = vmul.f32 %v703, 0.6931472
    %v705 = vmul.f32 %v135, %v135
    %v706 = vmul.f32 %v705, 0.5
    %v707 = vadd.f32 %v704, %v706
    %v708 = vsel %vm553, %v707, 0.0
    %v709 = vadd.f32 %v687, %v688
    %v710 = vadd.f32 %v709, %v689
    %v711 = vadd.f32 %v710, %v690
    %v712 = vadd.f32 %v711, %v691
    %v713 = vadd.f32 %v712, %v692
    %v714 = vadd.f32 %v713, %v693
    %v715 = vadd.f32 %v714, %v694
    %v716 = vadd.f32 %v715, %v695
    %v717 = vadd.f32 %v716, %v696
    %v718 = vadd.f32 %v717, %v697
    %v719 = vadd.f32 %v718, %v698
    %v720 = vadd.f32 %v719, %v699
    %v721 = vadd.f32 %v720, %v700
    %v722 = vadd.f32 %v721, %v701
    %v723 = vadd.f32 %v722, %v702
    %724 = vadd.xlane.f32.xlu0 %v723
    %v725 = vpop.xlane.xlu0 %724
    %v726 = vrot.slane %v725, 4
    %v727 = vadd.f32 %v725, %v726
    %v728 = vrot.slane %v727, 2
    %v729 = vadd.f32 %v727, %v728
    %v730 = vrot.slane %v729, 1
    %v731 = vadd.f32 %v729, %v730
    %s732 = vtos %v731
    %v733 = vsel %vm595, %v708, 0.0
    %734 = vadd.xlane.f32.xlu0 %v733
    %v735 = vpop.xlane.xlu0 %734
    %v736 = vrot.slane %v735, 4
    %v737 = vadd.f32 %v735, %v736
    %v738 = vrot.slane %v737, 2
    %v739 = vadd.f32 %v737, %v738
    %v740 = vrot.slane %v739, 1
    %v741 = vadd.f32 %v739, %v740
    %s742 = vtos %v741
    %s743 = sadd.f32 %s732, %s742
    %p744 = scmp.eq.s32.totalorder 0, 0
    // Predicated region
    $region46: #{tpu_custom_call.1} parent=1 // pred_check
      %p745 = pneg %p744
    $region47: #{tpu_custom_call.1} parent=1 // pred_check_branch
      %747 = sbr.rel (%p745) target = $region49
    $region48: #{tpu_custom_call.1} parent=1 // pred_region
      %vm748 = vcmask 0
      %749 = vst.msk [vmem:[#allocation11] sm:$0x1] %vm748, -851.1813
      %750 = vst.msk [vmem:[#allocation13] sm:$0x1] %vm748, -485.19955
    $region49: #{tpu_custom_call.1} parent=1 // pred_fallthru
      _
    %v751 = vld [vmem:[#allocation11] sm:$0x1]
    %s752 = ssub.f32 0.0, %s606
    %v753 = vrcp.pop 2.0
    %s754 = vtos %v753
    %s755 = smul.f32 %s752, %s754
    %v756 = vstv %s755
    %v757 = vadd.f32 %v751, %v756
    %vm758 = vcmask 0
    %759 = vst.msk [vmem:[#allocation11] sm:$0x1] %vm758, %v757
    %v760 = vld [vmem:[#allocation13] sm:$0x1]
    %s761 = ssub.f32 0.0, %s743
    %v762 = vstv %s761
    %v763 = vadd.f32 %v760, %v762
    %764 = vst.msk [vmem:[#allocation13] sm:$0x1] %vm758, %v763
    // Predicated region
    $region50: #{tpu_custom_call.1} parent=1 // pred_check
      _
    $region51: #{tpu_custom_call.1} parent=1 // pred_check_branch
      %766 = sbr.rel (0) target = $region53
    $region52: #{tpu_custom_call.1} parent=1 // pred_region
      %s768 = ssub.s32 128, 128
      %769 = vsyncadd [#allocation4], %s768
      %s771 = sshll.u32 [#allocation10], 4
      %s772 = int_to_ptr.vmem [resolvable:$true] %s771
      %774 = dma.vmem_to_hbm [thread:$0]  %s772, 128, %s7, [#allocation4]
    $region53: #{tpu_custom_call.1} parent=1 // pred_fallthru
      _
    // Predicated region
    $region54: #{tpu_custom_call.1} parent=1 // pred_check
      _
    $region55: #{tpu_custom_call.1} parent=1 // pred_check_branch
      %776 = sbr.rel (0) target = $region57
    $region56: #{tpu_custom_call.1} parent=1 // pred_region
      %s778 = ssub.s32 16, 16
      %779 = vsyncadd [#allocation12], %s778
      %s781 = sshll.u32 [#allocation11], 4
      %s782 = int_to_ptr.vmem [resolvable:$true] %s781
      %784 = dma.vmem_to_hbm [thread:$0]  %s782, 16, %s8, [#allocation12]
    $region57: #{tpu_custom_call.1} parent=1 // pred_fallthru
      _
    // Predicated region
    $region58: #{tpu_custom_call.1} parent=1 // pred_check
      _
    $region59: #{tpu_custom_call.1} parent=1 // pred_check_branch
      %786 = sbr.rel (0) target = $region61
    $region60: #{tpu_custom_call.1} parent=1 // pred_region
      %s788 = ssub.s32 16, 16
      %789 = vsyncadd [#allocation12], %s788
      %s791 = sshll.u32 [#allocation13], 4
      %s792 = int_to_ptr.vmem [resolvable:$true] %s791
      %794 = dma.vmem_to_hbm [thread:$0]  %s792, 16, %s9, [#allocation12]
    $region61: #{tpu_custom_call.1} parent=1 // pred_fallthru
      _
    // Predicated region
    $region62: #{tpu_custom_call.1} parent=1 // pred_check
      _
    $region63: #{tpu_custom_call.1} parent=1 // pred_check_branch
      %796 = sbr.rel (0) target = $region65
    $region64: #{tpu_custom_call.1} parent=1 // pred_region
      %797 = dma.done [#allocation4], 128
    $region65: #{tpu_custom_call.1} parent=1 // pred_fallthru
      _
    // Predicated region
    $region66: #{tpu_custom_call.1} parent=1 // pred_check
      _
    $region67: #{tpu_custom_call.1} parent=1 // pred_check_branch
      %799 = sbr.rel (0) target = $region69
    $region68: #{tpu_custom_call.1} parent=1 // pred_region
      %800 = dma.done [#allocation12], 16
    $region69: #{tpu_custom_call.1} parent=1 // pred_fallthru
      _
    // Predicated region
    $region70: #{tpu_custom_call.1} parent=1 // pred_check
      _
    $region71: #{tpu_custom_call.1} parent=1 // pred_check_branch
      %802 = sbr.rel (0) target = $region73
    $region72: #{tpu_custom_call.1} parent=1 // pred_region
      %803 = dma.done [#allocation12], 16
    $region73: #{tpu_custom_call.1} parent=1 // pred_fallthru
      _
    %804 = vsyncpa [#allocation3], 1
    %805 = vsyncpa [#allocation6], 1
    %806 = vsyncpa [#allocation9], 1
    %807 = vsyncpa [#allocation4], 1
    %808 = vsyncpa [#allocation12], 1

</llo_original>
